<compile_context>
chip_gen: v5e
topology: v5e:2x2
jax: 0.10.0
libtpu: 0.0.40
codegen_flags: <defaults>
</compile_context>

<pallas_src>
import jax
import jax.numpy as jnp
from jax.experimental import pallas as pl
from jax.experimental.pallas import tpu as pltpu
import numpy as np


# ----------------------------------------------------------------------------
# Kernel
# ----------------------------------------------------------------------------
def _pe_add_kernel(pos_ref, w_t_ref, x_ref, o_ref, pe_ref):
    """Fourier-feature PE (recomputed per step, cheap) + broadcast add.

    pos_ref : (TN, S)  f32   normalized grid positions for this N-tile
    w_t_ref : (S, Hh)  f32   learnable projection (pos_emb.T, pre-transposed)
    x_ref   : (Bt, TN, H)    folded-batch slab of the input
    o_ref   : (Bt, TN, H)
    pe_ref  : (TN, H)        per-step working buffer (activation-dtype for bf16)
    """
    S, Hh = w_t_ref.shape

    # K = S (2 or 3): unrolled VPU broadcast-FMA outer product -- no MXU.
    proj = pos_ref[:, 0:1] * w_t_ref[0:1, :]
    for s in range(1, S):
        proj = proj + pos_ref[:, s:s + 1] * w_t_ref[s:s + 1, :]
    proj = (2.0 * jnp.pi) * proj                       # (TN, Hh), f32

    # Write halves directly -- no lane-axis concatenate / extra temporary.
    pe_ref[:, :Hh] = jnp.sin(proj).astype(pe_ref.dtype)
    pe_ref[:, Hh:] = jnp.cos(proj).astype(pe_ref.dtype)

    # Steady state: mem-bound broadcast add over the folded batch dim.
    o_ref[...] = (x_ref[...] + pe_ref[...][None]).astype(o_ref.dtype)


# ----------------------------------------------------------------------------
# Block sizing helpers (dtype- and generation-aware)
# ----------------------------------------------------------------------------
def _vmem_cap_bytes():
    """Usable scoped-VMEM cap, generation-aware (64 MiB v7x, 128 MiB v5e/v6e)."""
    cap = 64 * 1024 * 1024
    try:
        info = pltpu.get_tpu_info()
        cap = int(getattr(info, "vmem_capacity_bytes", cap))
    except Exception:
        pass
    return max(16 * 1024 * 1024, int(cap * 0.6))


def _largest_mult8_divisor(n, upper):
    """Largest t <= upper with t % 8 == 0 and n % t == 0, else None."""
    t = min(n, upper)
    t -= t % 8
    while t >= 8:
        if n % t == 0:
            return t
        t -= 8
    return None


def _choose_blocks(B, N, H, itemsize, target_bytes):
    """Pick (Bt, TN) so Bt*TN*H*itemsize ~= target_bytes (multi-MiB steps)."""
    row_bytes = H * itemsize
    max_tn = max(8, target_bytes // max(row_bytes, 1))
    tn = _largest_mult8_divisor(N, max_tn)
    if tn is None:
        # No multiple-of-8 divisor of N fits the budget: full-N tile.
        # TODO(synk): masked ragged edge tile (pl.cdiv grid) for huge awkward N.
        tn = N
    elif tn == N and N >= 16:
        # Whole N fits in one tile: still expose >=2 tiles on the "parallel"
        # N axis so a second TensorCore (v7x) has work even at B == 1.
        half = _largest_mult8_divisor(N, N // 2)
        if half is not None:
            tn = half
    # Fold as many batch elements as fit (amortizes per-step pipeline overhead
    # and the per-step PE recompute across the whole batch group).
    blk_rows_bytes = tn * row_bytes
    max_bt = max(1, target_bytes // max(blk_rows_bytes, 1))
    bt = 1
    for cand in range(min(B, max_bt), 0, -1):
        if B % cand == 0:
            bt = cand
            break
    return bt, tn


# ----------------------------------------------------------------------------
# Wrapper
# ----------------------------------------------------------------------------
def positional_embedding_add(x, positions, pos_emb, *, block_rows=None,
                             batch_block=None, donate_x=False):
    """x: (B, N, H), positions: (N, S) f32, pos_emb: (H//2, S) f32."""
    B, N, H = x.shape
    Np, S = positions.shape
    assert Np == N, "positions rows must match sequence length"
    assert H % 2 == 0, "hidden_size must be even"
    Hh = H // 2
    assert pos_emb.shape == (Hh, S)

    pos = jnp.asarray(positions, jnp.float32)
    w_t = jnp.asarray(pos_emb, jnp.float32).T            # (S, Hh) glue transpose only

    itemsize = x.dtype.itemsize
    cap = _vmem_cap_bytes()
    # Per-step byte target: bigger on v5e/v6e (128 MiB VMEM), smaller on v7x.
    target = int(min(16 * 1024 * 1024, max(2 * 1024 * 1024, cap // 6)))

    bt_auto, tn_auto = _choose_blocks(B, N, H, itemsize, target)
    TN = block_rows if block_rows is not None else tn_auto
    Bt = batch_block if batch_block is not None else bt_auto
    assert N % TN == 0 and B % Bt == 0
    num_n, num_b = N // TN, B // Bt

    # PE working dtype: bf16 when activations are bf16 (halves scratch, drops
    # casts in the steady-state add); f32 otherwise.
    pe_dtype = x.dtype if x.dtype == jnp.bfloat16 else jnp.float32

    # VMEM budget: x + out double-buffered, PE scratch, tiny pos/w buffers.
    block_bytes = Bt * TN * H * itemsize
    pe_bytes = TN * H * jnp.dtype(pe_dtype).itemsize
    small_bytes = 2 * (TN * S * 4 + S * Hh * 4)
    need = 4 * block_bytes + pe_bytes + small_bytes + (1 << 20)
    vmem_limit = int(max(16 * 1024 * 1024, need))
    if need <= cap:
        vmem_limit = min(vmem_limit, cap)

    # NOTE: for real ViT configs H (and Hh) are multiples of 128 (lane-dense
    # stores). For tiny H (like the H=32 test) stores are masked; acceptable
    # at that scale.
    # TODO(synk): addition_type != "add" (torch.concatenate path) not implemented.
    return pl.pallas_call(
        _pe_add_kernel,
        out_shape=jax.ShapeDtypeStruct((B, N, H), x.dtype),
        grid_spec=pltpu.PrefetchScalarGridSpec(
            num_scalar_prefetch=0,
            grid=(num_n, num_b),                               # batch group innermost
            in_specs=[
                pl.BlockSpec((TN, S), lambda n, b: (n, 0)),    # positions
                pl.BlockSpec((S, Hh), lambda n, b: (0, 0)),    # pos_emb.T
                pl.BlockSpec((Bt, TN, H), lambda n, b: (b, n, 0)),   # x
            ],
            out_specs=pl.BlockSpec((Bt, TN, H), lambda n, b: (b, n, 0)),
            scratch_shapes=[pltpu.VMEM((TN, H), pe_dtype)],    # per-step PE buffer
        ),
        compiler_params=pltpu.CompilerParams(
            # PE is recomputed each step -> no cross-step state, so both axes
            # are safe to shard across cores (v7x 2-TC).
            dimension_semantics=("parallel", "parallel"),
            vmem_limit_bytes=vmem_limit,
        ),
        input_output_aliases=({2: 0} if donate_x else {}),
    )(pos, w_t, x)


# ----------------------------------------------------------------------------
# Position construction (replicates LearnableFPE.__init__ / n_tokens path)
# ----------------------------------------------------------------------------
def build_positions(grid_size, n_tokens=0):
    """meshgrid('ij') of linspace(0,1,g); token rows (linspace(2,3)) prepended."""
    sd = len(grid_size)
    axes = [jnp.linspace(0.0, 1.0, g) for g in grid_size]
    mesh = jnp.meshgrid(*axes, indexing="ij")
    pos = jnp.stack(mesh, axis=-1).reshape(-1, sd)        # (N, sd)
    if n_tokens > 0:
        # TODO(synk): 3D n_tokens path of the reference is ill-defined; this
        # mirrors the 2D behavior (token_positions[0, ...]).
        taxes = [jnp.linspace(2.0, 3.0, n_tokens) for _ in range(sd)]
        tmesh = jnp.stack(jnp.meshgrid(*taxes, indexing="ij"), axis=-1)
        tpos = tmesh[0, ...].reshape(-1, sd)
        pos = jnp.concatenate([tpos, pos], axis=0)
    return pos


def _reference(x, positions, pos_emb):
    proj = 2.0 * jnp.pi * jnp.einsum(
        "ns,hs->nh", positions.astype(jnp.float32), pos_emb.astype(jnp.float32),
        precision=jax.lax.Precision.HIGHEST)
    pe = jnp.concatenate([jnp.sin(proj), jnp.cos(proj)], axis=-1)
    return x.astype(jnp.float32) + pe[None]


# ----------------------------------------------------------------------------
if __name__ == "__main__":
    key = jax.random.PRNGKey(0)
    k1, k2, k3, k4, k5, k6 = jax.random.split(key, 6)

    # --- Config 1: module defaults at small scale ----------------------------
    # 2D, img_size=16, patch_size=4 -> grid=[4,4], n_patches=16, hidden=32, B=2
    spatial_dims = 2
    grid_size = [16 // 4] * spatial_dims
    n_patches = int(np.prod(grid_size))
    hidden, batch = 32, 2

    x = jax.random.normal(k1, (batch, n_patches, hidden), dtype=jnp.float32)
    pos_emb = jax.random.normal(k2, (hidden // 2, spatial_dims), dtype=jnp.float32)
    positions = build_positions(grid_size)
    out = jax.block_until_ready(positional_embedding_add(x, positions, pos_emb))
    ref = _reference(x, positions, pos_emb)
    np.testing.assert_allclose(np.asarray(out), np.asarray(ref), rtol=1e-4, atol=1e-4)

    # --- Config 2: tiled N + folded batch, lane-dense H, bf16 activations ----
    grid_size2 = [8, 8]                         # N = 64
    hidden2, batch2 = 128, 4
    x2 = jax.random.normal(k3, (batch2, 64, hidden2), dtype=jnp.bfloat16)
    pos_emb2 = jax.random.normal(k4, (hidden2 // 2, 2), dtype=jnp.float32)
    positions2 = build_positions(grid_size2)
    out2 = jax.block_until_ready(positional_embedding_add(x2, positions2, pos_emb2))
    ref2 = _reference(x2, positions2, pos_emb2)
    np.testing.assert_allclose(np.asarray(out2, dtype=np.float32),
                               np.asarray(ref2), rtol=0.0, atol=1e-1)

    # --- Config 3: n_tokens > 0 (class tokens prepended to positions) --------
    n_tokens = 2
    positions3 = build_positions(grid_size, n_tokens=n_tokens)     # N = 18
    x3 = jax.random.normal(k5, (batch, n_patches + n_tokens, hidden),
                           dtype=jnp.float32)
    pos_emb3 = jax.random.normal(k6, (hidden // 2, spatial_dims), dtype=jnp.float32)
    out3 = jax.block_until_ready(positional_embedding_add(x3, positions3, pos_emb3))
    ref3 = _reference(x3, positions3, pos_emb3)
    np.testing.assert_allclose(np.asarray(out3), np.asarray(ref3), rtol=1e-4, atol=1e-4)

    print("KERNEL_OK")
</pallas_src>

<mosaic_0001>
module attributes {stable_mosaic.version = 11 : i64} {
  func.func @_pe_add_kernel(%arg0: i32, %arg1: i32, %arg2: memref<8x2xf32, #tpu.memory_space<vmem>>, %arg3: memref<2x16xf32, #tpu.memory_space<vmem>>, %arg4: memref<2x8x32xf32, #tpu.memory_space<vmem>>, %arg5: memref<2x8x32xf32, #tpu.memory_space<vmem>>, %arg6: memref<8x32xf32, #tpu.memory_space<vmem>>) attributes {dimension_semantics = [#tpu.dimension_semantics<parallel>, #tpu.dimension_semantics<parallel>], iteration_bounds = array<i64: 2, 1>, scalar_prefetch = 0 : i64, scratch_operands = 1 : i64, tpu.core_type = #tpu.core_type<tc>, window_params = [{transform_indices = @transform_0, window_bounds = array<i64: 8, 2>}, {pipeline_mode = #tpu.pipeline_mode<synchronous>, transform_indices = @transform_1, window_bounds = array<i64: 2, 16>}, {transform_indices = @transform_2, window_bounds = array<i64: 2, 8, 32>}, {transform_indices = @transform_3, window_bounds = array<i64: 2, 8, 32>}]} {
    %c0 = arith.constant 0 : index
    %c0_0 = arith.constant 0 : index
    %0 = vector.load %arg2[%c0, %c0_0] : memref<8x2xf32, #tpu.memory_space<vmem>>, vector<8x1xf32>
    %c0_1 = arith.constant 0 : index
    %c0_2 = arith.constant 0 : index
    %1 = vector.load %arg3[%c0_1, %c0_2] : memref<2x16xf32, #tpu.memory_space<vmem>>, vector<1x16xf32>
    %2 = vector.broadcast %0 : vector<8x1xf32> to vector<8x16xf32>
    %3 = vector.broadcast %1 : vector<1x16xf32> to vector<8x16xf32>
    %4 = arith.mulf %2, %3 : vector<8x16xf32>
    %c0_3 = arith.constant 0 : index
    %c1 = arith.constant 1 : index
    %5 = vector.load %arg2[%c0_3, %c1] : memref<8x2xf32, #tpu.memory_space<vmem>>, vector<8x1xf32>
    %c1_4 = arith.constant 1 : index
    %c0_5 = arith.constant 0 : index
    %6 = vector.load %arg3[%c1_4, %c0_5] : memref<2x16xf32, #tpu.memory_space<vmem>>, vector<1x16xf32>
    %7 = vector.broadcast %5 : vector<8x1xf32> to vector<8x16xf32>
    %8 = vector.broadcast %6 : vector<1x16xf32> to vector<8x16xf32>
    %9 = arith.mulf %7, %8 : vector<8x16xf32>
    %10 = arith.addf %4, %9 : vector<8x16xf32>
    %cst = arith.constant 6.28318548 : f32
    %11 = vector.broadcast %cst : f32 to vector<8x16xf32>
    %12 = arith.mulf %11, %10 : vector<8x16xf32>
    %13 = math.sin %12 : vector<8x16xf32>
    %c0_6 = arith.constant 0 : index
    %c0_7 = arith.constant 0 : index
    %14 = vector.load %arg6[%c0_6, %c0_7] : memref<8x32xf32, #tpu.memory_space<vmem>>, vector<8x16xf32>
    tpu.vector_store %arg6[%c0_6, %c0_7], %13 {strides = array<i32>} : memref<8x32xf32, #tpu.memory_space<vmem>>, vector<8x16xf32>,
    %15 = math.cos %12 : vector<8x16xf32>
    %c0_8 = arith.constant 0 : index
    %c16 = arith.constant 16 : index
    %16 = vector.load %arg6[%c0_8, %c16] : memref<8x32xf32, #tpu.memory_space<vmem>>, vector<8x16xf32>
    tpu.vector_store %arg6[%c0_8, %c16], %15 {strides = array<i32>} : memref<8x32xf32, #tpu.memory_space<vmem>>, vector<8x16xf32>,
    %c0_9 = arith.constant 0 : index
    %c0_10 = arith.constant 0 : index
    %c0_11 = arith.constant 0 : index
    %17 = vector.load %arg4[%c0_9, %c0_10, %c0_11] : memref<2x8x32xf32, #tpu.memory_space<vmem>>, vector<2x8x32xf32>
    %c0_12 = arith.constant 0 : index
    %c0_13 = arith.constant 0 : index
    %18 = vector.load %arg6[%c0_12, %c0_13] : memref<8x32xf32, #tpu.memory_space<vmem>>, vector<8x32xf32>
    %19 = vector.shape_cast %18 : vector<8x32xf32> to vector<1x8x32xf32>
    %20 = vector.broadcast %19 : vector<1x8x32xf32> to vector<2x8x32xf32>
    %21 = arith.addf %17, %20 : vector<2x8x32xf32>
    %c0_14 = arith.constant 0 : index
    %c0_15 = arith.constant 0 : index
    %c0_16 = arith.constant 0 : index
    %22 = vector.load %arg5[%c0_14, %c0_15, %c0_16] : memref<2x8x32xf32, #tpu.memory_space<vmem>>, vector<2x8x32xf32>
    tpu.vector_store %arg5[%c0_14, %c0_15, %c0_16], %21 {strides = array<i32>} : memref<2x8x32xf32, #tpu.memory_space<vmem>>, vector<2x8x32xf32>,
    return
  }
  func.func @transform_0(%arg0: i32, %arg1: i32) -> (i32, i32) {
    %c0_i32 = arith.constant 0 : i32
    %c0_i32_0 = arith.constant 0 : i32
    return %arg0, %c0_i32 : i32, i32
  }
  func.func @transform_1(%arg0: i32, %arg1: i32) -> (i32, i32) {
    %c0_i32 = arith.constant 0 : i32
    %c0_i32_0 = arith.constant 0 : i32
    %c0_i32_1 = arith.constant 0 : i32
    return %c0_i32, %c0_i32_0 : i32, i32
  }
  func.func @transform_2(%arg0: i32, %arg1: i32) -> (i32, i32, i32) {
    %c0_i32 = arith.constant 0 : i32
    %c0_i32_0 = arith.constant 0 : i32
    return %arg1, %arg0, %c0_i32 : i32, i32, i32
  }
  func.func @transform_3(%arg0: i32, %arg1: i32) -> (i32, i32, i32) {
    %c0_i32 = arith.constant 0 : i32
    %c0_i32_0 = arith.constant 0 : i32
    return %arg1, %arg0, %c0_i32 : i32, i32, i32
  }
}

</mosaic_0001>

<llo_original>
// kernel: tpu_custom_call.1
$region0: #{tpu_custom_call.1}
  #allocation0 [shape = 'u32[]', space=smem, size = 0x4, offset = 0x4, fixed_abs, tag = 'smem constant byte address 0x4 - core index']
  #allocation1 [shape = 'u32[72,128]{1,0:T(1,128)}', space=vmem, size = 0x9000, scoped, tag = 'internal scratch']
  #allocation2 [shape = 'f32[8,32]{1,0:T(8,128)}', space=vmem, size = 0x1000, scoped, tag = 'scratch operand']
  %s0 = inlined_call_operand.vmem [shape: f32[16,2], index: 0, kind: input, shape index: {}]
  %s1 = inlined_call_operand.vmem [shape: f32[2,16], index: 1, kind: input, shape index: {}]
  %s2 = inlined_call_operand.hbm [shape: f32[2,16,32], index: 2, kind: input, shape index: {}]
  %s3 = inlined_call_operand.hbm [shape: f32[2,16,32], index: 3, kind: output, shape index: {}]
  %s4 = sld [smem:[#allocation0]]
  $region49: #{tpu_custom_call.1} parent=0
    _
  %s6 = ssub.s32 1, %s4
  %s7 = scalar_select 0, %s6, %s4
  $region1: #{tpu_custom_call.1} parent=0
    #allocation3 [shape = 'u8[16384]{0}', space=vmem, size = 0x4000, scoped, tag = 'input window, operand 2']
    #allocation4 [shape = 's32[2]{0}', space=sflag, size = 0x8, scoped, tag = 'scoped memory for tpu_custom_call.1']
    #allocation5 [shape = 's32[2]{0}', space=sflag, size = 0x8, scoped, tag = 'scoped memory for tpu_custom_call.1']
    #allocation6 [shape = 'u8[16384]{0}', space=vmem, size = 0x4000, scoped, tag = 'output window, operand 0']
    %8 = vsyncpa [#allocation4], 0
    %s9 = scalar_lea.sflag [#allocation4], 1
    %10 = vsyncpa %s9, 0
    %11 = vsyncpa [#allocation5], 0
    %s12 = scalar_lea.sflag [#allocation5], 1
    %13 = vsyncpa %s12, 0
    loop: start=0, step=1, limit=4
    $region2: #{tpu_custom_call.1} parent=1 // loop_pre_header
      _
    $region3: #{tpu_custom_call.1} parent=1 // loop_header
      %s15 = sphi 0, %s19
      %p16 = scmp.ge.s32.totalorder %s15, 4
      %s22 = sphi 0, %s34
      %s23 = sphi 0, %s30
      %s24 = sphi 0, %s22
      %s25 = sphi 0, %s23
      %s26 = sphi 0, %s24
      %s27 = sphi 0, %s25
      %s37 = sphi 0, %s39
      %s40 = sphi 0, %s37
      %s41 = sphi 0, %s40
      %s57 = sphi 0, %s41
      %s61 = sphi 0, %s61
      %s63 = sphi 0, %s61
      %s64 = sphi 0, %s63
      %s78 = sphi 0, %s64
      %s86 = sphi 0, %s88
      %s89 = sphi 0, %s86
      %s90 = sphi 0, %s89
      %s106 = sphi 0, %s90
      %s114 = sphi 0, %s116
      %s117 = sphi 0, %s114
      %s118 = sphi 0, %s117
      %s134 = sphi 0, %s118
    $region4: #{tpu_custom_call.1} parent=1 // loop_header_branch
      %18 = sbr.rel (%p16) target = $region8
    $region5: #{tpu_custom_call.1} parent=1 // loop_body
      %s20 = ssub.s32 %s15, 1
      %s21 = ssub.s32 %s15, 2
      %s28 = sadd.s32 1, %s23
      %p29 = scmp.ge.s32.totalorder %s28, 1
      %s30 = scalar_select %p29, 0, %s28
      %s31 = sadd.s32 1, %s22
      %s32 = scalar_select %p29, %s31, %s22
      %p33 = scmp.ge.s32.totalorder %s32, 2
      %s34 = scalar_select %p33, 0, %s32
      %s35 = ssub.s32 %s22, %s34
      %p36 = scmp.eq.s32.totalorder %s35, 0
      %s38 = sadd.s32 %s37, 1
      %s39 = scalar_select %p36, %s37, %s38
      %p42 = pneg %p36
      %p43 = scmp.eq.s32.totalorder %s15, 1
      %p44 = por %p42, %p43
      %p45 = scmp.ne.s32.totalorder %s37, %s40
      %p46 = scmp.eq.s32.totalorder %s15, 0
      %p47 = por %p45, %p46
      %p48 = scmp.ne.s32.totalorder %s37, %s40
      %p49 = scmp.eq.s32.totalorder %s20, 1
      %p50 = por %p48, %p49
      %p51 = scmp.ne.s32.totalorder %s40, %s41
      %p52 = scmp.eq.s32.totalorder %s20, 0
      %p53 = por %p51, %p52
      %p54 = scmp.ne.s32.totalorder %s40, %s41
      %p55 = scmp.eq.s32.totalorder %s21, 1
      %p56 = por %p54, %p55
      %p58 = scmp.ne.s32.totalorder %s41, %s57
      %p59 = scmp.eq.s32.totalorder %s21, 0
      %p60 = por %p58, %p59
      %s62 = sadd.s32 %s61, 1
      %p65 = scmp.eq.s32.totalorder %s15, 1
      %p66 = scmp.ne.s32.totalorder %s61, %s63
      %p67 = scmp.eq.s32.totalorder %s15, 0
      %p68 = por %p66, %p67
      %p69 = scmp.ne.s32.totalorder %s61, %s63
      %p70 = scmp.eq.s32.totalorder %s20, 1
      %p71 = por %p69, %p70
      %p72 = scmp.ne.s32.totalorder %s63, %s64
      %p73 = scmp.eq.s32.totalorder %s20, 0
      %p74 = por %p72, %p73
      %p75 = scmp.ne.s32.totalorder %s63, %s64
      %p76 = scmp.eq.s32.totalorder %s21, 1
      %p77 = por %p75, %p76
      %p79 = scmp.ne.s32.totalorder %s64, %s78
      %p80 = scmp.eq.s32.totalorder %s21, 0
      %p81 = por %p79, %p80
      %s82 = ssub.s32 %s23, %s30
      %s83 = ssub.s32 %s22, %s34
      %s84 = sor.u32 %s82, %s83
      %p85 = scmp.eq.s32.totalorder %s84, 0
      %s87 = sadd.s32 %s86, 1
      %s88 = scalar_select %p85, %s86, %s87
      %p91 = pneg %p85
      %p92 = scmp.eq.s32.totalorder %s15, 1
      %p93 = por %p91, %p92
      %p94 = scmp.ne.s32.totalorder %s86, %s89
      %p95 = scmp.eq.s32.totalorder %s15, 0
      %p96 = por %p94, %p95
      %p97 = scmp.ne.s32.totalorder %s86, %s89
      %p98 = scmp.eq.s32.totalorder %s20, 1
      %p99 = por %p97, %p98
      %p100 = scmp.ne.s32.totalorder %s89, %s90
      %p101 = scmp.eq.s32.totalorder %s20, 0
      %p102 = por %p100, %p101
      %p103 = scmp.ne.s32.totalorder %s89, %s90
      %p104 = scmp.eq.s32.totalorder %s21, 1
      %p105 = por %p103, %p104
      %p107 = scmp.ne.s32.totalorder %s90, %s106
      %p108 = scmp.eq.s32.totalorder %s21, 0
      %p109 = por %p107, %p108
      %s110 = ssub.s32 %s23, %s30
      %s111 = ssub.s32 %s22, %s34
      %s112 = sor.u32 %s110, %s111
      %p113 = scmp.eq.s32.totalorder %s112, 0
      %s115 = sadd.s32 %s114, 1
      %s116 = scalar_select %p113, %s114, %s115
      %p119 = pneg %p113
      %p120 = scmp.eq.s32.totalorder %s15, 1
      %p121 = por %p119, %p120
      %p122 = scmp.ne.s32.totalorder %s114, %s117
      %p123 = scmp.eq.s32.totalorder %s15, 0
      %p124 = por %p122, %p123
      %p125 = scmp.ne.s32.totalorder %s114, %s117
      %p126 = scmp.eq.s32.totalorder %s20, 1
      %p127 = por %p125, %p126
      %p128 = scmp.ne.s32.totalorder %s117, %s118
      %p129 = scmp.eq.s32.totalorder %s20, 0
      %p130 = por %p128, %p129
      %p131 = scmp.ne.s32.totalorder %s117, %s118
      %p132 = scmp.eq.s32.totalorder %s21, 1
      %p133 = por %p131, %p132
      %p135 = scmp.ne.s32.totalorder %s118, %s134
      %p136 = scmp.eq.s32.totalorder %s21, 0
      %p137 = por %p135, %p136
      %p138 = scmp.le.s32.totalorder 1, %s15
      %p139 = scmp.lt.s32.totalorder %s15, 3
      %p140 = pnand %p138, %p139
      %p141 = pneg %p140
      // Predicated region
      $region9: #{tpu_custom_call.1} parent=5 // pred_check
        _
      $region10: #{tpu_custom_call.1} parent=5 // pred_check_branch
        %143 = sbr.rel (%p140) target = $region12
      $region11: #{tpu_custom_call.1} parent=5 // pred_region
        %s144 = ssub.s32 %s15, 1
        // Predicated region
        $region13: #{tpu_custom_call.1} parent=11 // pred_check
          %p145 = pneg %p74
        $region14: #{tpu_custom_call.1} parent=11 // pred_check_branch
          %147 = sbr.rel (%p145) target = $region16
        $region15: #{tpu_custom_call.1} parent=11 // pred_region
          _
        $region16: #{tpu_custom_call.1} parent=11 // pred_fallthru
          _
      $region12: #{tpu_custom_call.1} parent=5 // pred_fallthru
        _
      %p148 = scmp.lt.s32.totalorder %s15, 2
      // Predicated region
      $region17: #{tpu_custom_call.1} parent=5 // pred_check
        %p149 = pneg %p148
      $region18: #{tpu_custom_call.1} parent=5 // pred_check_branch
        %151 = sbr.rel (%p149) target = $region20
      $region19: #{tpu_custom_call.1} parent=5 // pred_region
        // Predicated region
        $region21: #{tpu_custom_call.1} parent=19 // pred_check
          %p152 = pneg %p47
        $region22: #{tpu_custom_call.1} parent=19 // pred_check_branch
          %154 = sbr.rel (%p152) target = $region24
        $region23: #{tpu_custom_call.1} parent=19 // pred_region
          %p155 = scmp.lt.s32.totalorder %s22, 1
          %s156 = scalar_select %p155, %s22, 1
          %s157 = smul.addr %s156, 8
          %s158 = scalar_lea.vmem %s0, %s157
        $region24: #{tpu_custom_call.1} parent=19 // pred_fallthru
          _
        // Predicated region
        $region25: #{tpu_custom_call.1} parent=19 // pred_check
          %p159 = pneg %p96
        $region26: #{tpu_custom_call.1} parent=19 // pred_check_branch
          %161 = sbr.rel (%p159) target = $region28
        $region27: #{tpu_custom_call.1} parent=19 // pred_region
          %s162 = sand.u32 %s86, 1
          %s163 = scalar_lea.sflag [#allocation4], %s162
          %s164 = sand.u32 %s86, 1
          %s165 = smul.addr %s164, 16
          %s166 = scalar_lea.vmem [#allocation3], %s165
          %s167 = smul.u32 2, %s23
          %169 = vsyncadd %s163, 0
          %s170 = smul.addr %s167, 2
          %s171 = sadd.s32 %s22, %s170
          %s172 = smul.addr %s171, 8
          %s173 = scalar_lea.hbm %s2, %s172
          %s174 = sshll.u32 %s173, 4
          %s175 = int_to_ptr.hbm [resolvable:$true] %s174
          %s176 = sshll.u32 %s166, 4
          %s177 = int_to_ptr.vmem [resolvable:$true] %s176
          %182 = dma.hbm_to_vmem [thread:$0]  %s175, 256, %s177, %s163, 256, 128, 8
        $region28: #{tpu_custom_call.1} parent=19 // pred_fallthru
          _
      $region20: #{tpu_custom_call.1} parent=5 // pred_fallthru
        _
      %p183 = scmp.le.s32.totalorder 1, %s15
      %p184 = scmp.lt.s32.totalorder %s15, 3
      %p185 = pnand %p183, %p184
      %p186 = pneg %p185
      // Predicated region
      $region29: #{tpu_custom_call.1} parent=5 // pred_check
        _
      $region30: #{tpu_custom_call.1} parent=5 // pred_check_branch
        %188 = sbr.rel (%p185) target = $region32
      $region31: #{tpu_custom_call.1} parent=5 // pred_region
        %s189 = ssub.s32 %s15, 1
        %s190 = sand.u32 %s89, 1
        %s191 = scalar_lea.sflag [#allocation4], %s190
        %s192 = sand.u32 %s89, 1
        %s193 = smul.addr %s192, 16
        %s194 = scalar_lea.vmem [#allocation3], %s193
        // Predicated region
        $region33: #{tpu_custom_call.1} parent=31 // pred_check
          %p195 = pneg %p102
        $region34: #{tpu_custom_call.1} parent=31 // pred_check_branch
          %197 = sbr.rel (%p195) target = $region36
        $region35: #{tpu_custom_call.1} parent=31 // pred_region
          %199 = dma.done %s191, 256
        $region36: #{tpu_custom_call.1} parent=31 // pred_fallthru
          _
        %p200 = scmp.lt.s32.totalorder %s24, 1
        %s201 = scalar_select %p200, %s24, 1
        %s202 = smul.addr %s201, 8
        %s203 = scalar_lea.vmem %s0, %s202
        %p204 = pneg %p53
        %p205 = pneg %p50
        %p206 = pneg %p74
        %p207 = pneg %p71
        %s208 = sand.u32 %s89, 1
        %s209 = scalar_lea.sflag [#allocation4], %s208
        %s210 = sand.u32 %s89, 1
        %s211 = smul.addr %s210, 16
        %s212 = scalar_lea.vmem [#allocation3], %s211
        %p213 = pneg %p102
        %p214 = pneg %p99
        %p215 = pneg %p130
        %p216 = pneg %p127
        %s217 = sand.u32 %s117, 1
        %s218 = scalar_lea.sflag [#allocation5], %s217
        %s219 = sand.u32 %s117, 1
        %s220 = smul.addr %s219, 16
        %s221 = scalar_lea.vmem [#allocation6], %s220
        %p222 = scmp.lt.s32.totalorder %s24, 1
        %s223 = scalar_select %p222, %s24, 1
        %s224 = smul.addr %s223, 8
        %s225 = scalar_lea.vmem %s0, %s224
        %s226 = smul.u32 2, %s25
        %s227 = smul.u32 2, %s25
        %v228 = vld [vmem:[%s225] sm:$0xff]
        %v229 = vld [vmem:[%s1] sm:$0x1]
        %231 = vset.pattern.permute.xlu0 0
        %232 = vperm.xlu0 %231, %v228
        %v233 = vpop.permute.xlu0 %232
        %v235 = vperm.slane %v229, 0
        %v236 = vmul.f32 %v233, %v235
        %v237 = vld [vmem:[%s1 + $0x1] sm:$0x1]
        %238 = vset.pattern.permute.xlu0 1
        %239 = vperm.xlu0 %238, %v228
        %v240 = vpop.permute.xlu0 %239
        %v242 = vperm.slane %v237, 0
        %v243 = vmul.f32 %v240, %v242
        %v244 = vadd.f32 %v236, %v243
        %v245 = vmul.f32 %v244, 6.2831855
        %v246 = vand.u32 2147483647, %v245
        %vm247 = vcmp.le.f32.partialorder %v246, 0.7853982
        %vm248 = vcmp.lt.s32.totalorder %v245, 0
        %v249 = vand.u32 %v245, 2139095040
        %v250 = vshrl.u32 %v249, 23
        %v251 = vsub.s32 %v250, 127
        %v252 = vand.u32 2147483647, %v245
        %v253 = vand.u32 %v252, 8388607
        %v254 = vor.u32 %v253, 8388608
        %v255 = vsub.s32 0, %v254
        %v256 = vadd.s32 %v251, 1
        %vm257 = vcmp.gt.s32.totalorder %v256, 0
        %v258 = vsel %vm257, %v256, 0
        %v259 = vshrl.u32 %v258, 5
        %v260 = vand.u32 %v258, 31
        %v261 = vsub.s32 32, %v260
        %v262 = vshrl.u32 683565275, %v261
        %v263 = vshll.u32 683565275, %v260
        %v264 = vshrl.u32 2475754826, %v261
        %v265 = vor.u32 %v263, %v264
        %v266 = vshll.u32 2475754826, %v260
        %v267 = vshrl.u32 2131351028, %v261
        %v268 = vor.u32 %v266, %v267
        %v269 = vshll.u32 2131351028, %v260
        %v270 = vshrl.u32 2102212464, %v261
        %v271 = vor.u32 %v269, %v270
        %v272 = vshll.u32 2102212464, %v260
        %v273 = vshrl.u32 920167782, %v261
        %v274 = vor.u32 %v272, %v273
        %v275 = vshll.u32 920167782, %v260
        %v276 = vshrl.u32 1326507024, %v261
        %v277 = vor.u32 %v275, %v276
        %vm278 = vcmp.lt.s32.totalorder %v259, 1
        %vm279 = vcmp.lt.s32.totalorder %v259, 2
        %vm280 = vcmp.lt.s32.totalorder %v259, 3
        %vm281 = vcmp.lt.s32.totalorder %v259, 4
        %v282 = vsel %vm278, %v262, %v265
        %v283 = vsel %vm281, %v271, 2102212464
        %v284 = vsel %vm280, %v268, %v283
        %v285 = vsel %vm279, %v282, %v284
        %v286 = vsel %vm278, %v265, %v268
        %v287 = vsel %vm281, %v274, 920167782
        %v288 = vsel %vm280, %v271, %v287
        %v289 = vsel %vm279, %v286, %v288
        %v290 = vsel %vm278, %v268, %v271
        %v291 = vsel %vm281, %v277, 1326507024
        %v292 = vsel %vm280, %v274, %v291
        %v293 = vsel %vm279, %v290, %v292
        %v294 = vshll.u32 %v254, 8
        %v295 = vand.u32 %v294, 65535
        %v296 = vshrl.u32 %v294, 16
        %v297 = vand.u32 %v293, 65535
        %v298 = vshrl.u32 %v293, 16
        %v299 = vmul.u32 %v295, %v297
        %v300 = vmul.u32 %v295, %v298
        %v301 = vmul.u32 %v296, %v297
        %v302 = vmul.u32 %v296, %v298
        %v303 = vshll.u32 %v300, 16
        %v304 = vshrl.u32 %v300, 16
        %v305 = vshll.u32 %v301, 16
        %v306 = vshrl.u32 %v301, 16
        %vm307 = vc.u32 %v299, %v303
        %v308 = vsel %vm307, 1, 0
        %v309 = vadd.s32 %v299, %v303
        %v310 = vadd.s32 %v302, %v308
        %vm311 = vc.u32 %v309, %v305
        %v312 = vsel %vm311, 1, 0
        %v313 = vadd.s32 %v309, %v305
        %v314 = vadd.s32 %v310, %v312
        %v315 = vadd.s32 %v314, %v304
        %v316 = vadd.s32 %v315, %v306
        %v317 = vand.u32 %v294, 65535
        %v318 = vshrl.u32 %v294, 16
        %v319 = vand.u32 %v289, 65535
        %v320 = vshrl.u32 %v289, 16
        %v321 = vmul.u32 %v317, %v319
        %v322 = vmul.u32 %v317, %v320
        %v323 = vmul.u32 %v318, %v319
        %v324 = vmul.u32 %v318, %v320
        %v325 = vshll.u32 %v322, 16
        %v326 = vshrl.u32 %v322, 16
        %v327 = vshll.u32 %v323, 16
        %v328 = vshrl.u32 %v323, 16
        %vm329 = vc.u32 %v321, %v325
        %v330 = vsel %vm329, 1, 0
        %v331 = vadd.s32 %v321, %v325
        %v332 = vadd.s32 %v324, %v330
        %vm333 = vc.u32 %v331, %v327
        %v334 = vsel %vm333, 1, 0
        %v335 = vadd.s32 %v331, %v327
        %v336 = vadd.s32 %v332, %v334
        %v337 = vadd.s32 %v336, %v326
        %v338 = vadd.s32 %v337, %v328
        %v339 = vmul.u32 %v294, %v285
        %v340 = vadd.s32 %v316, %v335
        %vm341 = vc.u32 %v316, %v335
        %v342 = vadd.s32 %v338, 1
        %v343 = vsel %vm341, %v342, %v338
        %v344 = vadd.s32 %v339, %v343
        %v345 = vadd.s32 %v344, 536870912
        %v346 = vshrl.u32 %v345, 30
        %v347 = vshll.u32 %v346, 30
        %v348 = vsub.s32 %v344, %v347
        %vm349 = vcmp.lt.s32.totalorder %v348, 0
        %v350 = vsub.s32 0, %v348
        %v351 = vsel %vm349, %v350, %v348
        %v352 = vclz %v351
        %v353 = vsub.s32 %v352, 2
        %vm354 = vcmp.gt.s32.totalorder 0, %v353
        %v355 = vsel %vm354, 0, %v353
        %v356 = vsub.s32 32, %v355
        %v357 = vshll.u32 %v348, %v355
        %v358 = vshrl.u32 %v340, %v356
        %v359 = vor.u32 %v357, %v358
        %v360 = vsub.s32 4294967266, %v355
        %v361 = vadd.s32 %v360, 127
        %v362 = vshll.u32 %v361, 23
        %v363 = vor.u32 4788187, %v362
        %v364 = vand.u32 2147483647, %v363
        %v366 = vcvt.s32.f32 %v359
        %v367 = vmul.f32 %v366, %v364
        %v368 = vxor.u32 %v367, 2147483648
        %v369 = vsel %vm248, %v368, %v367
        %v370 = vsub.s32 4, %v346
        %v371 = vsel %vm248, %v370, %v346
        %v372 = vsel %vm247, %v245, %v369
        %v373 = vsel %vm247, 0, %v371
        %v374 = vmul.f32 %v372, %v372
        %v375 = vmul.f32 %v374, -0.001358992
        %v376 = vadd.f32 %v375, 0.041655596
        %v377 = vmul.f32 %v374, %v376
        %v378 = vadd.f32 %v377, -0.4999988
        %v379 = vmul.f32 %v374, %v378
        %v380 = vadd.f32 1.0, %v379
        %v381 = vmul.f32 %v372, %v372
        %v382 = vmul.f32 %v381, -0.00019511016
        %v383 = vadd.f32 %v382, 0.008332121
        %v384 = vmul.f32 %v381, %v383
        %v385 = vadd.f32 %v384, -0.16666654
        %v386 = vmul.f32 %v381, %v385
        %v387 = vadd.f32 %v386, 1.0
        %v388 = vmul.f32 %v387, %v372
        %vm389 = vweird.f32 %v245
        %v390 = vadd.s32 %v373, 3
        %v391 = vand.u32 %v390, 3
        %vm392 = vcmp.lt.s32.totalorder %v391, 2
        %vm393 = vcmp.eq.s32.totalorder %v391, 0
        %v394 = vxor.u32 %v388, 2147483648
        %v395 = vsel %vm393, %v380, %v394
        %vm396 = vcmp.eq.s32.totalorder %v391, 2
        %v397 = vxor.u32 %v380, 2147483648
        %v398 = vsel %vm396, %v397, %v388
        %v399 = vsel %vm392, %v395, %v398
        %v400 = vsel %vm389, nan, %v399
        %vm401 = vcmask 130048
        %402 = vst.msk [vmem:[#allocation2] sm:$0xff] %vm401, %v400
        %v403 = vand.u32 2147483647, %v245
        %vm404 = vcmp.le.f32.partialorder %v403, 0.7853982
        %vm405 = vcmp.lt.s32.totalorder %v245, 0
        %v406 = vand.u32 %v245, 2139095040
        %v407 = vshrl.u32 %v406, 23
        %v408 = vsub.s32 %v407, 127
        %v409 = vand.u32 2147483647, %v245
        %v410 = vand.u32 %v409, 8388607
        %v411 = vor.u32 %v410, 8388608
        %v412 = vsub.s32 0, %v411
        %v413 = vadd.s32 %v408, 1
        %vm414 = vcmp.gt.s32.totalorder %v413, 0
        %v415 = vsel %vm414, %v413, 0
        %v416 = vshrl.u32 %v415, 5
        %v417 = vand.u32 %v415, 31
        %v418 = vsub.s32 32, %v417
        %v419 = vshrl.u32 683565275, %v418
        %v420 = vshll.u32 683565275, %v417
        %v421 = vshrl.u32 2475754826, %v418
        %v422 = vor.u32 %v420, %v421
        %v423 = vshll.u32 2475754826, %v417
        %v424 = vshrl.u32 2131351028, %v418
        %v425 = vor.u32 %v423, %v424
        %v426 = vshll.u32 2131351028, %v417
        %v427 = vshrl.u32 2102212464, %v418
        %v428 = vor.u32 %v426, %v427
        %v429 = vshll.u32 2102212464, %v417
        %v430 = vshrl.u32 920167782, %v418
        %v431 = vor.u32 %v429, %v430
        %v432 = vshll.u32 920167782, %v417
        %v433 = vshrl.u32 1326507024, %v418
        %v434 = vor.u32 %v432, %v433
        %vm435 = vcmp.lt.s32.totalorder %v416, 1
        %vm436 = vcmp.lt.s32.totalorder %v416, 2
        %vm437 = vcmp.lt.s32.totalorder %v416, 3
        %vm438 = vcmp.lt.s32.totalorder %v416, 4
        %v439 = vsel %vm435, %v419, %v422
        %v440 = vsel %vm438, %v428, 2102212464
        %v441 = vsel %vm437, %v425, %v440
        %v442 = vsel %vm436, %v439, %v441
        %v443 = vsel %vm435, %v422, %v425
        %v444 = vsel %vm438, %v431, 920167782
        %v445 = vsel %vm437, %v428, %v444
        %v446 = vsel %vm436, %v443, %v445
        %v447 = vsel %vm435, %v425, %v428
        %v448 = vsel %vm438, %v434, 1326507024
        %v449 = vsel %vm437, %v431, %v448
        %v450 = vsel %vm436, %v447, %v449
        %v451 = vshll.u32 %v411, 8
        %v452 = vand.u32 %v451, 65535
        %v453 = vshrl.u32 %v451, 16
        %v454 = vand.u32 %v450, 65535
        %v455 = vshrl.u32 %v450, 16
        %v456 = vmul.u32 %v452, %v454
        %v457 = vmul.u32 %v452, %v455
        %v458 = vmul.u32 %v453, %v454
        %v459 = vmul.u32 %v453, %v455
        %v460 = vshll.u32 %v457, 16
        %v461 = vshrl.u32 %v457, 16
        %v462 = vshll.u32 %v458, 16
        %v463 = vshrl.u32 %v458, 16
        %vm464 = vc.u32 %v456, %v460
        %v465 = vsel %vm464, 1, 0
        %v466 = vadd.s32 %v456, %v460
        %v467 = vadd.s32 %v459, %v465
        %vm468 = vc.u32 %v466, %v462
        %v469 = vsel %vm468, 1, 0
        %v470 = vadd.s32 %v466, %v462
        %v471 = vadd.s32 %v467, %v469
        %v472 = vadd.s32 %v471, %v461
        %v473 = vadd.s32 %v472, %v463
        %v474 = vand.u32 %v451, 65535
        %v475 = vshrl.u32 %v451, 16
        %v476 = vand.u32 %v446, 65535
        %v477 = vshrl.u32 %v446, 16
        %v478 = vmul.u32 %v474, %v476
        %v479 = vmul.u32 %v474, %v477
        %v480 = vmul.u32 %v475, %v476
        %v481 = vmul.u32 %v475, %v477
        %v482 = vshll.u32 %v479, 16
        %v483 = vshrl.u32 %v479, 16
        %v484 = vshll.u32 %v480, 16
        %v485 = vshrl.u32 %v480, 16
        %vm486 = vc.u32 %v478, %v482
        %v487 = vsel %vm486, 1, 0
        %v488 = vadd.s32 %v478, %v482
        %v489 = vadd.s32 %v481, %v487
        %vm490 = vc.u32 %v488, %v484
        %v491 = vsel %vm490, 1, 0
        %v492 = vadd.s32 %v488, %v484
        %v493 = vadd.s32 %v489, %v491
        %v494 = vadd.s32 %v493, %v483
        %v495 = vadd.s32 %v494, %v485
        %v496 = vmul.u32 %v451, %v442
        %v497 = vadd.s32 %v473, %v492
        %vm498 = vc.u32 %v473, %v492
        %v499 = vadd.s32 %v495, 1
        %v500 = vsel %vm498, %v499, %v495
        %v501 = vadd.s32 %v496, %v500
        %v502 = vadd.s32 %v501, 536870912
        %v503 = vshrl.u32 %v502, 30
        %v504 = vshll.u32 %v503, 30
        %v505 = vsub.s32 %v501, %v504
        %vm506 = vcmp.lt.s32.totalorder %v505, 0
        %v507 = vsub.s32 0, %v505
        %v508 = vsel %vm506, %v507, %v505
        %v509 = vclz %v508
        %v510 = vsub.s32 %v509, 2
        %vm511 = vcmp.gt.s32.totalorder 0, %v510
        %v512 = vsel %vm511, 0, %v510
        %v513 = vsub.s32 32, %v512
        %v514 = vshll.u32 %v505, %v512
        %v515 = vshrl.u32 %v497, %v513
        %v516 = vor.u32 %v514, %v515
        %v517 = vsub.s32 4294967266, %v512
        %v518 = vadd.s32 %v517, 127
        %v519 = vshll.u32 %v518, 23
        %v520 = vor.u32 4788187, %v519
        %v521 = vand.u32 2147483647, %v520
        %v523 = vcvt.s32.f32 %v516
        %v524 = vmul.f32 %v523, %v521
        %v525 = vxor.u32 %v524, 2147483648
        %v526 = vsel %vm405, %v525, %v524
        %v527 = vsub.s32 4, %v503
        %v528 = vsel %vm405, %v527, %v503
        %v529 = vsel %vm404, %v245, %v526
        %v530 = vsel %vm404, 0, %v528
        %v531 = vmul.f32 %v529, %v529
        %v532 = vmul.f32 %v531, -0.001358992
        %v533 = vadd.f32 %v532, 0.041655596
        %v534 = vmul.f32 %v531, %v533
        %v535 = vadd.f32 %v534, -0.4999988
        %v536 = vmul.f32 %v531, %v535
        %v537 = vadd.f32 1.0, %v536
        %v538 = vmul.f32 %v529, %v529
        %v539 = vmul.f32 %v538, -0.00019511016
        %v540 = vadd.f32 %v539, 0.008332121
        %v541 = vmul.f32 %v538, %v540
        %v542 = vadd.f32 %v541, -0.16666654
        %v543 = vmul.f32 %v538, %v542
        %v544 = vadd.f32 %v543, 1.0
        %v545 = vmul.f32 %v544, %v529
        %vm546 = vweird.f32 %v245
        %v547 = vand.u32 %v530, 3
        %vm548 = vcmp.lt.s32.totalorder %v547, 2
        %vm549 = vcmp.eq.s32.totalorder %v547, 0
        %v550 = vxor.u32 %v545, 2147483648
        %v551 = vsel %vm549, %v537, %v550
        %vm552 = vcmp.eq.s32.totalorder %v547, 2
        %v553 = vxor.u32 %v537, 2147483648
        %v554 = vsel %vm552, %v553, %v545
        %v555 = vsel %vm548, %v551, %v554
        %v556 = vsel %vm546, nan, %v555
        %558 = vrot.lane.b32.xlu0 %v556, 16
        %v559 = vpop.permute.xlu0 %558
        %vm561 = vcmask 261248
        %562 = vst.msk [vmem:[#allocation2] sm:$0xff] %vm561, %v559
        %v563 = vld [vmem:[%s194] sm:$0xff]
        %v564 = vld [vmem:[%s194 + $0x8] sm:$0xff]
        %v565 = vld [vmem:[#allocation2] sm:$0xff]
        %v566 = vadd.f32 %v563, %v565
        %v567 = vadd.f32 %v564, %v565
        %vm568 = vcmask 261120
        %569 = vst.msk [vmem:[%s221] sm:$0xff] %vm568, %v566
        %570 = vst.msk [vmem:[%s221 + $0x8] sm:$0xff] %vm568, %v567
        %s571 = sand.u32 %s117, 1
        %s572 = scalar_lea.sflag [#allocation5], %s571
        %s573 = sand.u32 %s117, 1
        %s574 = smul.addr %s573, 16
        %s575 = scalar_lea.vmem [#allocation6], %s574
        // Predicated region
        $region37: #{tpu_custom_call.1} parent=31 // pred_check
          %p576 = pneg %p127
        $region38: #{tpu_custom_call.1} parent=31 // pred_check_branch
          %578 = sbr.rel (%p576) target = $region40
        $region39: #{tpu_custom_call.1} parent=31 // pred_region
          %s579 = smul.u32 2, %s25
          %581 = vsyncadd %s572, 0
          %s582 = smul.addr %s579, 2
          %s583 = sadd.s32 %s24, %s582
          %s584 = smul.addr %s583, 8
          %s585 = scalar_lea.hbm %s3, %s584
          %s586 = sshll.u32 %s575, 4
          %s587 = int_to_ptr.vmem [resolvable:$true] %s586
          %s588 = sshll.u32 %s585, 4
          %s589 = int_to_ptr.hbm [resolvable:$true] %s588
          %594 = dma.vmem_to_hbm [thread:$0]  %s587, 256, %s589, %s572, 128, 256, 8
        $region40: #{tpu_custom_call.1} parent=31 // pred_fallthru
          _
      $region32: #{tpu_custom_call.1} parent=5 // pred_fallthru
        _
      %p595 = scmp.le.s32.totalorder 2, %s15
      // Predicated region
      $region41: #{tpu_custom_call.1} parent=5 // pred_check
        %p596 = pneg %p595
      $region42: #{tpu_custom_call.1} parent=5 // pred_check_branch
        %598 = sbr.rel (%p596) target = $region44
      $region43: #{tpu_custom_call.1} parent=5 // pred_region
        %s599 = ssub.s32 %s15, 2
        // Predicated region
        $region45: #{tpu_custom_call.1} parent=43 // pred_check
          %p600 = pneg %p133
        $region46: #{tpu_custom_call.1} parent=43 // pred_check_branch
          %602 = sbr.rel (%p600) target = $region48
        $region47: #{tpu_custom_call.1} parent=43 // pred_region
          %s603 = sand.u32 %s118, 1
          %s604 = scalar_lea.sflag [#allocation5], %s603
          %s605 = sand.u32 %s118, 1
          %s606 = smul.addr %s605, 16
          %s607 = scalar_lea.vmem [#allocation6], %s606
          %609 = dma.done %s604, 256
        $region48: #{tpu_custom_call.1} parent=43 // pred_fallthru
          _
      $region44: #{tpu_custom_call.1} parent=5 // pred_fallthru
        _
    $region6: #{tpu_custom_call.1} parent=1 // loop_footer
      %s19 = sadd.s32 1, %s15
    $region7: #{tpu_custom_call.1} parent=1 // loop_footer_branch
      %14 = sbr.rel target = $region3
    $region8: #{tpu_custom_call.1} parent=1 // loop_exit
      _
    %610 = vsyncpa [#allocation4], 1
    %s611 = scalar_lea.sflag [#allocation4], 1
    %612 = vsyncpa %s611, 1
    %613 = vsyncpa [#allocation5], 1
    %s614 = scalar_lea.sflag [#allocation5], 1
    %615 = vsyncpa %s614, 1

</llo_original>
